<compile_context>
chip_gen: v5e
topology: v5e:2x2
jax: 0.10.0
libtpu: 0.0.40
codegen_flags: <defaults>
</compile_context>

<pallas_src>
import functools

import jax
import jax.numpy as jnp
import numpy as np
from jax.experimental import pallas as pl
from jax.experimental.pallas import tpu as pltpu


# Off-center taps of the 3x3 stencil, in fixed order.
_TAPS = tuple((di, dj) for di in range(3) for dj in range(3)
              if not (di == 1 and dj == 1))


# ----------------------------- Pallas kernel --------------------------------
def _depthwise3x3_kernel(H, W, n_mults, kers_ref, masks_ref, x_ref, out_ref):
    """Depthwise 3x3 'same' correlation, all multipliers, one channel block.

    kers_ref : SMEM (n_mults*9,) f32 -- flattened 3x3 kernels, one per mult
    masks_ref: VMEM (8, H*W)      f32 -- border mask per off-center tap
    x_ref    : VMEM (c_blk, H*W)  f32 -- input channels, H*W on the lane axis
    out_ref  : VMEM (n_mults, c_blk, H*W) f32 -- outputs for every multiplier
    """
    HW = H * W
    x = x_ref[...].astype(jnp.float32)                       # (c_blk, HW)

    # Masked, rolled taps: computed ONCE per channel block and reused by every
    # multiplier below (rolls/masks are multiplier-invariant -> XLU work and
    # the mask multiply are not repeated per multiplier).
    taps = []
    for t, (di, dj) in enumerate(_TAPS):
        shift = ((1 - di) * W + (1 - dj)) % HW
        rolled = pltpu.roll(x, shift=shift, axis=1)           # XLU
        taps.append(masks_ref[t:t + 1, :] * rolled)           # fold border mask

    # Static unrolled multiplier loop: pure VPU MACs per multiplier.
    for m in range(n_mults):
        k = [kers_ref[m * 9 + t] for t in range(9)]           # SMEM scalars
        acc = k[4] * x                                        # center tap
        for t, (di, dj) in enumerate(_TAPS):
            acc = acc + k[di * 3 + dj] * taps[t]
        out_ref[m] = acc.astype(out_ref.dtype)


# --------------------------- tiling / VMEM sizing ----------------------------
def _vmem_sizes():
    """Returns (tile budget bytes, vmem_limit_bytes) from physical VMEM."""
    try:
        phys = int(pltpu.get_tpu_info().vmem_capacity_bytes)
    except Exception:                       # conservative default (v7x, 64 MiB)
        phys = 64 * 1024 * 1024
    limit = min(max(phys * 3 // 4, 32 * 1024 * 1024), 96 * 1024 * 1024)
    return limit // 2, limit


def _pick_c_block(C, HW, n_mults, budget_bytes):
    """Largest legal channel block whose live VMEM footprint fits the budget."""
    # f32 bytes live per channel row per grid step:
    #   2x double-buffered input + 2*n_mults double-buffered output
    #   + ~9 masked/rolled taps held live in the body (+ slack).
    per_row = (2 + 2 * n_mults + 10) * 4 * HW
    cap = max(1, budget_bytes // per_row)
    if C <= cap:
        # Prefer >= 2 clean channel blocks when C permits (v7x has 2 TCs and
        # the only parallel grid axis is the channel-block axis).
        half = C // 2
        if C >= 16 and half % 8 == 0 and half <= cap:
            return half
        return C
    # Largest divisor of C that is a multiple of 8 (clean full blocks).
    for cb in range(min(C, cap), 7, -1):
        if C % cb == 0 and cb % 8 == 0:
            return cb
    # Ragged fallback: largest multiple of 8 under the cap; cdiv grid pads the
    # last block (per-channel op, so padded rows are never written back).
    if cap >= 8:
        return (cap // 8) * 8
    # C > cap but C < 8: full C is the only layout-legal block shape.
    return C


# ------------------------------ pallas wrapper --------------------------------
def depthwise3x3_all_mults(kers_flat, masks, x_flat, H, W):
    """kers_flat: (n_mults*9,) f32, masks: (8, H*W) f32, x_flat: (C, H*W) f32
    -> (n_mults, C, H*W) f32."""
    n_mults = kers_flat.shape[0] // 9
    C, HW = x_flat.shape
    budget, vmem_limit = _vmem_sizes()
    c_blk = _pick_c_block(C, HW, n_mults, budget)
    n_cblk = pl.cdiv(C, c_blk)

    kernel = functools.partial(_depthwise3x3_kernel, H, W, n_mults)
    cost = pl.CostEstimate(
        flops=2 * 9 * n_mults * C * HW + 16 * C * HW,
        transcendentals=0,
        bytes_accessed=4 * (C * HW + n_mults * C * HW + 8 * HW + n_mults * 9))

    return pl.pallas_call(
        kernel,
        out_shape=jax.ShapeDtypeStruct((n_mults, C, HW), jnp.float32),
        grid=(n_cblk,),
        in_specs=[
            # Flattened kernel table: tiny, scalar-indexed -> whole array in
            # SMEM (1D avoids the 2D SMEM last-dim pad 9 -> 128 words).
            pl.BlockSpec(memory_space=pltpu.MemorySpace.SMEM),
            # Border-mask table: constant across the grid, DMA'd once, reused.
            pl.BlockSpec((8, HW), lambda i: (0, 0)),
            # Input channel block: streamed along the (parallel) grid axis.
            pl.BlockSpec((c_blk, HW), lambda i: (i, 0)),
        ],
        out_specs=pl.BlockSpec((n_mults, c_blk, HW), lambda i: (0, i, 0)),
        compiler_params=pltpu.CompilerParams(
            dimension_semantics=("parallel",),
            vmem_limit_bytes=vmem_limit),
        cost_estimate=cost,
    )(kers_flat, masks, x_flat)


# --------------------------- Forward_Model port ------------------------------
def _border_masks(H, W):
    """(8, H*W) f32: 1 where the off-center 3x3 tap stays inside the image."""
    h = np.arange(H * W) // W
    w = np.arange(H * W) % W
    rows = []
    for di, dj in _TAPS:
        hm = np.ones(H * W) if di == 1 else (h >= 1 if di == 0 else h <= H - 2)
        wm = np.ones(H * W) if dj == 1 else (w >= 1 if dj == 0 else w <= W - 2)
        rows.append(hm.astype(np.float32) * wm.astype(np.float32))
    return jnp.asarray(np.stack(rows), dtype=jnp.float32)


def make_forward_model_params(mul_approx_func_arr=(1,)):
    """Deterministic parameter init, matching Forward_Model.__init__."""
    n = len(mul_approx_func_arr)
    weight = jnp.asarray(
        np.tile(np.array([1.0, 2.0, 1.0, 2.0, 4.0, 2.0, 1.0, 2.0, 1.0]) / 16.0,
                (n, 1)), dtype=jnp.float32)                       # (n, 9)
    scale = jnp.asarray(np.tile(np.array([16.0]), (n, 1)),
                        dtype=jnp.float32)                        # (n, 1)
    weight_factor = jnp.asarray(np.tile(np.array([16.0]), (n, 1)),
                                dtype=jnp.float32)                # (n, 1)
    return dict(weight=weight, scale=scale, weight_factor=weight_factor,
                mult_list=tuple(mul_approx_func_arr))


def forward_model_forward(params, x):
    """Equivalent of Forward_Model.forward(input, acc=False).

    x: (1, C, H, W) float32 (PyTorch NCHW, batch must be 1)
    returns: (num_mults, 1, C, H, W) float32
    """
    assert x.shape[0] == 1, "Forward_Model forward requires batch size 1"
    C, H, W = x.shape[1], x.shape[2], x.shape[3]
    assert H >= 2 and W >= 2, "3x3 border masks assume H >= 2 and W >= 2"
    n_mults = len(params["mult_list"])

    # In-place .data clamps followed by hardtanh == plain clamps here.
    w_clamped = jnp.clip(params["weight"], 0.001, 0.999)            # (n, 9)
    wf_clamped = jnp.clip(params["weight_factor"], 1.001, 254.999)  # (n, 1)
    kers_flat = (w_clamped * wf_clamped).astype(jnp.float32).reshape(-1)

    masks = _border_masks(H, W)                                      # (8, HW)
    # Free contiguous reshape: lanes carry H*W (lane-dense); no host-side pad.
    x_flat = x[0].astype(jnp.float32).reshape(C, H * W)
    out_flat = depthwise3x3_all_mults(kers_flat, masks, x_flat, H, W)
    return out_flat.reshape(n_mults, 1, C, H, W)


# ------------------------------- reference -----------------------------------
def forward_model_reference(params, x):
    C, H, W = x.shape[1], x.shape[2], x.shape[3]
    xpad = jnp.pad(x.astype(jnp.float32)[0], ((0, 0), (1, 1), (1, 1)))
    outs = []
    for ii in range(len(params["mult_list"])):
        ker = (jnp.clip(params["weight"][ii], 0.001, 0.999)
               * jnp.clip(params["weight_factor"][ii], 1.001, 254.999)
               ).reshape(3, 3).astype(jnp.float32)
        acc = jnp.zeros((C, H, W), jnp.float32)
        for di in range(3):
            for dj in range(3):
                acc = acc + ker[di, dj] * xpad[:, di:di + H, dj:dj + W]
        outs.append(acc)
    return jnp.stack(outs)[:, None]


# --------------------------------- main ---------------------------------------
if __name__ == "__main__":
    # Small shapes consistent with the module: batch=1, channels(size)=4,
    # image_size=16, two approximate-multiplier indices (fused in one call).
    size = 4
    image_size = 16
    mults = (1, 2)
    params = make_forward_model_params(mul_approx_func_arr=mults)

    key = jax.random.PRNGKey(0)
    kw, kx = jax.random.split(key)
    # Deterministically perturb per-multiplier weights (module init tiles
    # identical rows) so the fused in-body multiplier loop is actually
    # exercised with distinct kernels.
    params["weight"] = jnp.clip(
        params["weight"]
        + 0.05 * jax.random.uniform(kw, params["weight"].shape,
                                    dtype=jnp.float32),
        0.001, 0.999)

    x = jax.random.uniform(kx, (1, size, image_size, image_size),
                           dtype=jnp.float32) * 255.0

    out = forward_model_forward(params, x)
    out = jax.block_until_ready(out)

    ref = forward_model_reference(params, x)
    assert out.shape == (len(mults), 1, size, image_size, image_size), out.shape
    np.testing.assert_allclose(np.asarray(out), np.asarray(ref),
                               rtol=1e-5, atol=1e-4)
    print("KERNEL_OK")
</pallas_src>

<mosaic_0001>
module attributes {stable_mosaic.version = 11 : i64} {
  func.func @_depthwise3x3_kernel(%arg0: i32, %arg1: memref<18xf32, #tpu.memory_space<smem>>, %arg2: memref<8x256xf32, #tpu.memory_space<vmem>>, %arg3: memref<4x256xf32, #tpu.memory_space<vmem>>, %arg4: memref<2x4x256xf32, #tpu.memory_space<vmem>>) attributes {dimension_semantics = [#tpu.dimension_semantics<parallel>], iteration_bounds = array<i64: 1>, scalar_prefetch = 0 : i64, scratch_operands = 0 : i64, tpu.core_type = #tpu.core_type<tc>, window_params = [{transform_indices = @transform_0, window_bounds = array<i64: 18>}, {pipeline_mode = #tpu.pipeline_mode<synchronous>, transform_indices = @transform_1, window_bounds = array<i64: 8, 256>}, {transform_indices = @transform_2, window_bounds = array<i64: 4, 256>}, {transform_indices = @transform_3, window_bounds = array<i64: 2, 4, 256>}]} {
    %c0 = arith.constant 0 : index
    %c0_0 = arith.constant 0 : index
    %0 = vector.load %arg3[%c0, %c0_0] : memref<4x256xf32, #tpu.memory_space<vmem>>, vector<4x256xf32>
    %c17_i32 = arith.constant 17 : i32
    %1 = tpu.dynamic_rotate %0 by %c17_i32 dim 1 : vector<4x256xf32>, i32 -> vector<4x256xf32>
    %c0_1 = arith.constant 0 : index
    %c0_2 = arith.constant 0 : index
    %2 = vector.load %arg2[%c0_1, %c0_2] : memref<8x256xf32, #tpu.memory_space<vmem>>, vector<1x256xf32>
    %3 = vector.broadcast %2 : vector<1x256xf32> to vector<4x256xf32>
    %4 = arith.mulf %3, %1 : vector<4x256xf32>
    %c16_i32 = arith.constant 16 : i32
    %5 = tpu.dynamic_rotate %0 by %c16_i32 dim 1 : vector<4x256xf32>, i32 -> vector<4x256xf32>
    %c1 = arith.constant 1 : index
    %c0_3 = arith.constant 0 : index
    %6 = vector.load %arg2[%c1, %c0_3] : memref<8x256xf32, #tpu.memory_space<vmem>>, vector<1x256xf32>
    %7 = vector.broadcast %6 : vector<1x256xf32> to vector<4x256xf32>
    %8 = arith.mulf %7, %5 : vector<4x256xf32>
    %c15_i32 = arith.constant 15 : i32
    %9 = tpu.dynamic_rotate %0 by %c15_i32 dim 1 : vector<4x256xf32>, i32 -> vector<4x256xf32>
    %c2 = arith.constant 2 : index
    %c0_4 = arith.constant 0 : index
    %10 = vector.load %arg2[%c2, %c0_4] : memref<8x256xf32, #tpu.memory_space<vmem>>, vector<1x256xf32>
    %11 = vector.broadcast %10 : vector<1x256xf32> to vector<4x256xf32>
    %12 = arith.mulf %11, %9 : vector<4x256xf32>
    %c1_i32 = arith.constant 1 : i32
    %13 = tpu.dynamic_rotate %0 by %c1_i32 dim 1 : vector<4x256xf32>, i32 -> vector<4x256xf32>
    %c3 = arith.constant 3 : index
    %c0_5 = arith.constant 0 : index
    %14 = vector.load %arg2[%c3, %c0_5] : memref<8x256xf32, #tpu.memory_space<vmem>>, vector<1x256xf32>
    %15 = vector.broadcast %14 : vector<1x256xf32> to vector<4x256xf32>
    %16 = arith.mulf %15, %13 : vector<4x256xf32>
    %c255_i32 = arith.constant 255 : i32
    %17 = tpu.dynamic_rotate %0 by %c255_i32 dim 1 : vector<4x256xf32>, i32 -> vector<4x256xf32>
    %c4 = arith.constant 4 : index
    %c0_6 = arith.constant 0 : index
    %18 = vector.load %arg2[%c4, %c0_6] : memref<8x256xf32, #tpu.memory_space<vmem>>, vector<1x256xf32>
    %19 = vector.broadcast %18 : vector<1x256xf32> to vector<4x256xf32>
    %20 = arith.mulf %19, %17 : vector<4x256xf32>
    %c241_i32 = arith.constant 241 : i32
    %21 = tpu.dynamic_rotate %0 by %c241_i32 dim 1 : vector<4x256xf32>, i32 -> vector<4x256xf32>
    %c5 = arith.constant 5 : index
    %c0_7 = arith.constant 0 : index
    %22 = vector.load %arg2[%c5, %c0_7] : memref<8x256xf32, #tpu.memory_space<vmem>>, vector<1x256xf32>
    %23 = vector.broadcast %22 : vector<1x256xf32> to vector<4x256xf32>
    %24 = arith.mulf %23, %21 : vector<4x256xf32>
    %c240_i32 = arith.constant 240 : i32
    %25 = tpu.dynamic_rotate %0 by %c240_i32 dim 1 : vector<4x256xf32>, i32 -> vector<4x256xf32>
    %c6 = arith.constant 6 : index
    %c0_8 = arith.constant 0 : index
    %26 = vector.load %arg2[%c6, %c0_8] : memref<8x256xf32, #tpu.memory_space<vmem>>, vector<1x256xf32>
    %27 = vector.broadcast %26 : vector<1x256xf32> to vector<4x256xf32>
    %28 = arith.mulf %27, %25 : vector<4x256xf32>
    %c239_i32 = arith.constant 239 : i32
    %29 = tpu.dynamic_rotate %0 by %c239_i32 dim 1 : vector<4x256xf32>, i32 -> vector<4x256xf32>
    %c7 = arith.constant 7 : index
    %c0_9 = arith.constant 0 : index
    %30 = vector.load %arg2[%c7, %c0_9] : memref<8x256xf32, #tpu.memory_space<vmem>>, vector<1x256xf32>
    %31 = vector.broadcast %30 : vector<1x256xf32> to vector<4x256xf32>
    %32 = arith.mulf %31, %29 : vector<4x256xf32>
    %c0_10 = arith.constant 0 : index
    %33 = memref.load %arg1[%c0_10] : memref<18xf32, #tpu.memory_space<smem>>
    %c1_11 = arith.constant 1 : index
    %34 = memref.load %arg1[%c1_11] : memref<18xf32, #tpu.memory_space<smem>>
    %c2_12 = arith.constant 2 : index
    %35 = memref.load %arg1[%c2_12] : memref<18xf32, #tpu.memory_space<smem>>
    %c3_13 = arith.constant 3 : index
    %36 = memref.load %arg1[%c3_13] : memref<18xf32, #tpu.memory_space<smem>>
    %c4_14 = arith.constant 4 : index
    %37 = memref.load %arg1[%c4_14] : memref<18xf32, #tpu.memory_space<smem>>
    %c5_15 = arith.constant 5 : index
    %38 = memref.load %arg1[%c5_15] : memref<18xf32, #tpu.memory_space<smem>>
    %c6_16 = arith.constant 6 : index
    %39 = memref.load %arg1[%c6_16] : memref<18xf32, #tpu.memory_space<smem>>
    %c7_17 = arith.constant 7 : index
    %40 = memref.load %arg1[%c7_17] : memref<18xf32, #tpu.memory_space<smem>>
    %c8 = arith.constant 8 : index
    %41 = memref.load %arg1[%c8] : memref<18xf32, #tpu.memory_space<smem>>
    %42 = vector.broadcast %37 : f32 to vector<4x256xf32>
    %43 = arith.mulf %42, %0 : vector<4x256xf32>
    %44 = vector.broadcast %33 : f32 to vector<4x256xf32>
    %45 = arith.mulf %44, %4 : vector<4x256xf32>
    %46 = arith.addf %43, %45 : vector<4x256xf32>
    %47 = vector.broadcast %34 : f32 to vector<4x256xf32>
    %48 = arith.mulf %47, %8 : vector<4x256xf32>
    %49 = arith.addf %46, %48 : vector<4x256xf32>
    %50 = vector.broadcast %35 : f32 to vector<4x256xf32>
    %51 = arith.mulf %50, %12 : vector<4x256xf32>
    %52 = arith.addf %49, %51 : vector<4x256xf32>
    %53 = vector.broadcast %36 : f32 to vector<4x256xf32>
    %54 = arith.mulf %53, %16 : vector<4x256xf32>
    %55 = arith.addf %52, %54 : vector<4x256xf32>
    %56 = vector.broadcast %38 : f32 to vector<4x256xf32>
    %57 = arith.mulf %56, %20 : vector<4x256xf32>
    %58 = arith.addf %55, %57 : vector<4x256xf32>
    %59 = vector.broadcast %39 : f32 to vector<4x256xf32>
    %60 = arith.mulf %59, %24 : vector<4x256xf32>
    %61 = arith.addf %58, %60 : vector<4x256xf32>
    %62 = vector.broadcast %40 : f32 to vector<4x256xf32>
    %63 = arith.mulf %62, %28 : vector<4x256xf32>
    %64 = arith.addf %61, %63 : vector<4x256xf32>
    %65 = vector.broadcast %41 : f32 to vector<4x256xf32>
    %66 = arith.mulf %65, %32 : vector<4x256xf32>
    %67 = arith.addf %64, %66 : vector<4x256xf32>
    %c0_18 = arith.constant 0 : index
    %c0_19 = arith.constant 0 : index
    %c0_20 = arith.constant 0 : index
    %68 = vector.load %arg4[%c0_18, %c0_19, %c0_20] : memref<2x4x256xf32, #tpu.memory_space<vmem>>, vector<1x4x256xf32>
    %69 = vector.shape_cast %68 : vector<1x4x256xf32> to vector<4x256xf32>
    %70 = vector.shape_cast %67 : vector<4x256xf32> to vector<1x4x256xf32>
    tpu.vector_store %arg4[%c0_18, %c0_19, %c0_20], %70 {strides = array<i32>} : memref<2x4x256xf32, #tpu.memory_space<vmem>>, vector<1x4x256xf32>,
    %c9 = arith.constant 9 : index
    %71 = memref.load %arg1[%c9] : memref<18xf32, #tpu.memory_space<smem>>
    %c10 = arith.constant 10 : index
    %72 = memref.load %arg1[%c10] : memref<18xf32, #tpu.memory_space<smem>>
    %c11 = arith.constant 11 : index
    %73 = memref.load %arg1[%c11] : memref<18xf32, #tpu.memory_space<smem>>
    %c12 = arith.constant 12 : index
    %74 = memref.load %arg1[%c12] : memref<18xf32, #tpu.memory_space<smem>>
    %c13 = arith.constant 13 : index
    %75 = memref.load %arg1[%c13] : memref<18xf32, #tpu.memory_space<smem>>
    %c14 = arith.constant 14 : index
    %76 = memref.load %arg1[%c14] : memref<18xf32, #tpu.memory_space<smem>>
    %c15 = arith.constant 15 : index
    %77 = memref.load %arg1[%c15] : memref<18xf32, #tpu.memory_space<smem>>
    %c16 = arith.constant 16 : index
    %78 = memref.load %arg1[%c16] : memref<18xf32, #tpu.memory_space<smem>>
    %c17 = arith.constant 17 : index
    %79 = memref.load %arg1[%c17] : memref<18xf32, #tpu.memory_space<smem>>
    %80 = vector.broadcast %75 : f32 to vector<4x256xf32>
    %81 = arith.mulf %80, %0 : vector<4x256xf32>
    %82 = vector.broadcast %71 : f32 to vector<4x256xf32>
    %83 = arith.mulf %82, %4 : vector<4x256xf32>
    %84 = arith.addf %81, %83 : vector<4x256xf32>
    %85 = vector.broadcast %72 : f32 to vector<4x256xf32>
    %86 = arith.mulf %85, %8 : vector<4x256xf32>
    %87 = arith.addf %84, %86 : vector<4x256xf32>
    %88 = vector.broadcast %73 : f32 to vector<4x256xf32>
    %89 = arith.mulf %88, %12 : vector<4x256xf32>
    %90 = arith.addf %87, %89 : vector<4x256xf32>
    %91 = vector.broadcast %74 : f32 to vector<4x256xf32>
    %92 = arith.mulf %91, %16 : vector<4x256xf32>
    %93 = arith.addf %90, %92 : vector<4x256xf32>
    %94 = vector.broadcast %76 : f32 to vector<4x256xf32>
    %95 = arith.mulf %94, %20 : vector<4x256xf32>
    %96 = arith.addf %93, %95 : vector<4x256xf32>
    %97 = vector.broadcast %77 : f32 to vector<4x256xf32>
    %98 = arith.mulf %97, %24 : vector<4x256xf32>
    %99 = arith.addf %96, %98 : vector<4x256xf32>
    %100 = vector.broadcast %78 : f32 to vector<4x256xf32>
    %101 = arith.mulf %100, %28 : vector<4x256xf32>
    %102 = arith.addf %99, %101 : vector<4x256xf32>
    %103 = vector.broadcast %79 : f32 to vector<4x256xf32>
    %104 = arith.mulf %103, %32 : vector<4x256xf32>
    %105 = arith.addf %102, %104 : vector<4x256xf32>
    %c1_21 = arith.constant 1 : index
    %c0_22 = arith.constant 0 : index
    %c0_23 = arith.constant 0 : index
    %106 = vector.load %arg4[%c1_21, %c0_22, %c0_23] : memref<2x4x256xf32, #tpu.memory_space<vmem>>, vector<1x4x256xf32>
    %107 = vector.shape_cast %106 : vector<1x4x256xf32> to vector<4x256xf32>
    %108 = vector.shape_cast %105 : vector<4x256xf32> to vector<1x4x256xf32>
    tpu.vector_store %arg4[%c1_21, %c0_22, %c0_23], %108 {strides = array<i32>} : memref<2x4x256xf32, #tpu.memory_space<vmem>>, vector<1x4x256xf32>,
    return
  }
  func.func @transform_0(%arg0: i32) -> i32 {
    %c0_i32 = arith.constant 0 : i32
    %c0_i32_0 = arith.constant 0 : i32
    return %c0_i32 : i32
  }
  func.func @transform_1(%arg0: i32) -> (i32, i32) {
    %c0_i32 = arith.constant 0 : i32
    %c0_i32_0 = arith.constant 0 : i32
    %c0_i32_1 = arith.constant 0 : i32
    return %c0_i32, %c0_i32_0 : i32, i32
  }
  func.func @transform_2(%arg0: i32) -> (i32, i32) {
    %c0_i32 = arith.constant 0 : i32
    %c0_i32_0 = arith.constant 0 : i32
    return %arg0, %c0_i32 : i32, i32
  }
  func.func @transform_3(%arg0: i32) -> (i32, i32, i32) {
    %c0_i32 = arith.constant 0 : i32
    %c0_i32_0 = arith.constant 0 : i32
    %c0_i32_1 = arith.constant 0 : i32
    return %c0_i32, %arg0, %c0_i32_0 : i32, i32, i32
  }
}

</mosaic_0001>

<llo_original>
// kernel: tpu_custom_call.1
$region0: #{tpu_custom_call.1}
  #allocation0 [shape = 'u32[]', space=smem, size = 0x4, offset = 0x4, fixed_abs, tag = 'smem constant byte address 0x4 - core index']
  #allocation1 [shape = 'u32[72,128]{1,0:T(1,128)}', space=vmem, size = 0x9000, scoped, tag = 'internal scratch']
  %s0 = inlined_call_operand.hbm [shape: f32[18], index: 0, kind: input, shape index: {}]
  %s1 = inlined_call_operand.hbm [shape: f32[8,256], index: 1, kind: input, shape index: {}]
  %s2 = inlined_call_operand.hbm [shape: f32[4,256], index: 2, kind: input, shape index: {}]
  %s3 = inlined_call_operand.hbm [shape: f32[2,4,256], index: 3, kind: output, shape index: {}]
  %s4 = sld [smem:[#allocation0]]
  $region34: #{tpu_custom_call.1} parent=0
    _
  %s6 = ssub.s32 1, %s4
  %s7 = scalar_select 0, %s6, %s4
  $region1: #{tpu_custom_call.1} parent=0
    #allocation2 [shape = 'u8[512]{0}', space=smem, size = 0x200, scoped, tag = 'input window, operand 0, single buffered']
    #allocation3 [shape = 's32[1]{0}', space=sflag, size = 0x4, scoped, tag = 'scoped memory for tpu_custom_call.1']
    #allocation4 [shape = 's32[1]{0}', space=sflag, size = 0x4, scoped, tag = 'scoped memory for tpu_custom_call.1']
    #allocation5 [shape = 's32[1]{0}', space=sflag, size = 0x4, scoped, tag = 'scoped memory for tpu_custom_call.1']
    #allocation6 [shape = 'u8[8192]{0}', space=vmem, size = 0x2000, scoped, tag = 'input window, operand 1, single buffered']
    #allocation7 [shape = 'u8[4096]{0}', space=vmem, size = 0x1000, scoped, tag = 'input window, operand 2, single buffered']
    #allocation8 [shape = 's32[1]{0}', space=sflag, size = 0x4, scoped, tag = 'scoped memory for tpu_custom_call.1']
    #allocation9 [shape = 'u8[8192]{0}', space=vmem, size = 0x2000, scoped, tag = 'output window, operand 0, single buffered']
    %8 = vsyncpa [#allocation5], 0
    %9 = vsyncpa [#allocation3], 0
    %10 = vsyncpa [#allocation8], 0
    %11 = vsyncpa [#allocation4], 0
    // Predicated region
    $region2: #{tpu_custom_call.1} parent=1 // pred_check
      _
    $region3: #{tpu_custom_call.1} parent=1 // pred_check_branch
      %13 = sbr.rel (0) target = $region5
    $region4: #{tpu_custom_call.1} parent=1 // pred_region
      %15 = vsyncadd [#allocation5], 0
      %s17 = sshll.u32 %s0, 4
      %s18 = int_to_ptr.hbm [resolvable:$true] %s17
      %20 = dma.hbm_to_smem %s18, 16, [#allocation2], [#allocation5]
    $region5: #{tpu_custom_call.1} parent=1 // pred_fallthru
      _
    // Predicated region
    $region6: #{tpu_custom_call.1} parent=1 // pred_check
      _
    $region7: #{tpu_custom_call.1} parent=1 // pred_check_branch
      %22 = sbr.rel (0) target = $region9
    $region8: #{tpu_custom_call.1} parent=1 // pred_region
      %24 = vsyncadd [#allocation3], 0
      %s26 = sshll.u32 %s1, 4
      %s27 = int_to_ptr.hbm [resolvable:$true] %s26
      %s28 = sshll.u32 [#allocation6], 4
      %s29 = int_to_ptr.vmem [resolvable:$true] %s28
      %31 = dma.hbm_to_vmem [thread:$0]  %s27, 256, %s29, [#allocation3]
    $region9: #{tpu_custom_call.1} parent=1 // pred_fallthru
      _
    // Predicated region
    $region10: #{tpu_custom_call.1} parent=1 // pred_check
      _
    $region11: #{tpu_custom_call.1} parent=1 // pred_check_branch
      %33 = sbr.rel (0) target = $region13
    $region12: #{tpu_custom_call.1} parent=1 // pred_region
      %35 = vsyncadd [#allocation8], 0
      %s37 = sshll.u32 %s2, 4
      %s38 = int_to_ptr.hbm [resolvable:$true] %s37
      %s39 = sshll.u32 [#allocation7], 4
      %s40 = int_to_ptr.vmem [resolvable:$true] %s39
      %42 = dma.hbm_to_vmem [thread:$0]  %s38, 128, %s40, [#allocation8]
    $region13: #{tpu_custom_call.1} parent=1 // pred_fallthru
      _
    // Predicated region
    $region14: #{tpu_custom_call.1} parent=1 // pred_check
      _
    $region15: #{tpu_custom_call.1} parent=1 // pred_check_branch
      %44 = sbr.rel (0) target = $region17
    $region16: #{tpu_custom_call.1} parent=1 // pred_region
      %46 = dma.done [#allocation5], 16
    $region17: #{tpu_custom_call.1} parent=1 // pred_fallthru
      _
    // Predicated region
    $region18: #{tpu_custom_call.1} parent=1 // pred_check
      _
    $region19: #{tpu_custom_call.1} parent=1 // pred_check_branch
      %48 = sbr.rel (0) target = $region21
    $region20: #{tpu_custom_call.1} parent=1 // pred_region
      %50 = dma.done [#allocation3], 256
    $region21: #{tpu_custom_call.1} parent=1 // pred_fallthru
      _
    // Predicated region
    $region22: #{tpu_custom_call.1} parent=1 // pred_check
      _
    $region23: #{tpu_custom_call.1} parent=1 // pred_check_branch
      %52 = sbr.rel (0) target = $region25
    $region24: #{tpu_custom_call.1} parent=1 // pred_region
      %54 = dma.done [#allocation8], 128
    $region25: #{tpu_custom_call.1} parent=1 // pred_fallthru
      _
    %55 = sfence
    %v56 = vld [vmem:[#allocation7] sm:$0xff]
    %58 = vst [vmem:[#allocation1] ss:$2 sm:$0xff] %v56
    %v59 = vld.sshfl [vmem:[#allocation1] sm:$0xff pattern:$0x75316420]
    %v60 = vld.sshfl [vmem:[#allocation1 + $0x8] sm:$0xff pattern:$0x75316420]
    %63 = vrot.lane.b32.xlu0 %v59, 17
    %v64 = vpop.permute.xlu0 %63
    %65 = vrot.lane.b32.xlu0 %v60, 17
    %v66 = vpop.permute.xlu0 %65
    %v67 = vlaneseq
    %v68 = vand.u32 %v67, 127
    %vm69 = vcmp.lt.s32.totalorder %v68, 17
    %v70 = vsel %vm69, %v64, %v66
    %v71 = vsel %vm69, %v66, %v64
    %v72 = vld [vmem:[#allocation6] ss:$8 sm:$0x3]
    %v74 = vperm.slane %v72, 0
    %v75 = vperm.slane %v72, 1
    %v78 = vmul.f32 %v74, %v71
    %v79 = vmul.f32 %v75, %v70
    %80 = vst [vmem:[#allocation1] ss:$2 sm:$0xff] %v56
    %v81 = vld.sshfl [vmem:[#allocation1] sm:$0xff pattern:$0x75316420]
    %v82 = vld.sshfl [vmem:[#allocation1 + $0x8] sm:$0xff pattern:$0x75316420]
    %85 = vrot.lane.b32.xlu0 %v81, 16
    %v86 = vpop.permute.xlu0 %85
    %87 = vrot.lane.b32.xlu0 %v82, 16
    %v88 = vpop.permute.xlu0 %87
    %vm89 = vcmp.lt.s32.totalorder %v68, 16
    %v90 = vsel %vm89, %v86, %v88
    %v91 = vsel %vm89, %v88, %v86
    %s92 = scalar_lea.vmem [#allocation6], 1
    %v93 = vld [vmem:[%s92] ss:$8 sm:$0x3]
    %v95 = vperm.slane %v93, 0
    %v96 = vperm.slane %v93, 1
    %v99 = vmul.f32 %v95, %v91
    %v100 = vmul.f32 %v96, %v90
    %101 = vst [vmem:[#allocation1] ss:$2 sm:$0xff] %v56
    %v102 = vld.sshfl [vmem:[#allocation1] sm:$0xff pattern:$0x75316420]
    %v103 = vld.sshfl [vmem:[#allocation1 + $0x8] sm:$0xff pattern:$0x75316420]
    %106 = vrot.lane.b32.xlu0 %v102, 15
    %v107 = vpop.permute.xlu0 %106
    %108 = vrot.lane.b32.xlu0 %v103, 15
    %v109 = vpop.permute.xlu0 %108
    %vm110 = vcmp.lt.s32.totalorder %v68, 15
    %v111 = vsel %vm110, %v107, %v109
    %v112 = vsel %vm110, %v109, %v107
    %s113 = scalar_lea.vmem [#allocation6], 2
    %v114 = vld [vmem:[%s113] ss:$8 sm:$0x3]
    %v116 = vperm.slane %v114, 0
    %v117 = vperm.slane %v114, 1
    %v120 = vmul.f32 %v116, %v112
    %v121 = vmul.f32 %v117, %v111
    %122 = vst [vmem:[#allocation1] ss:$2 sm:$0xff] %v56
    %v123 = vld.sshfl [vmem:[#allocation1] sm:$0xff pattern:$0x75316420]
    %v124 = vld.sshfl [vmem:[#allocation1 + $0x8] sm:$0xff pattern:$0x75316420]
    %127 = vrot.lane.b32.xlu0 %v123, 1
    %v128 = vpop.permute.xlu0 %127
    %129 = vrot.lane.b32.xlu0 %v124, 1
    %v130 = vpop.permute.xlu0 %129
    %vm131 = vcmp.lt.s32.totalorder %v68, 1
    %v132 = vsel %vm131, %v128, %v130
    %v133 = vsel %vm131, %v130, %v128
    %s134 = scalar_lea.vmem [#allocation6], 3
    %v135 = vld [vmem:[%s134] ss:$8 sm:$0x3]
    %v137 = vperm.slane %v135, 0
    %v138 = vperm.slane %v135, 1
    %v141 = vmul.f32 %v137, %v133
    %v142 = vmul.f32 %v138, %v132
    %143 = vst [vmem:[#allocation1] ss:$2 sm:$0xff] %v56
    %v144 = vld.sshfl [vmem:[#allocation1] sm:$0xff pattern:$0x75316420]
    %v145 = vld.sshfl [vmem:[#allocation1 + $0x8] sm:$0xff pattern:$0x75316420]
    %148 = vrot.lane.b32.xlu0 %v144, 127
    %v149 = vpop.permute.xlu0 %148
    %150 = vrot.lane.b32.xlu0 %v145, 127
    %v151 = vpop.permute.xlu0 %150
    %vm152 = vcmp.lt.s32.totalorder %v68, 127
    %v153 = vsel %vm152, %v149, %v151
    %v154 = vsel %vm152, %v151, %v149
    %s155 = scalar_lea.vmem [#allocation6], 4
    %v156 = vld [vmem:[%s155] ss:$8 sm:$0x3]
    %v158 = vperm.slane %v156, 0
    %v159 = vperm.slane %v156, 1
    %v162 = vmul.f32 %v158, %v153
    %v163 = vmul.f32 %v159, %v154
    %164 = vst [vmem:[#allocation1] ss:$2 sm:$0xff] %v56
    %v165 = vld.sshfl [vmem:[#allocation1] sm:$0xff pattern:$0x75316420]
    %v166 = vld.sshfl [vmem:[#allocation1 + $0x8] sm:$0xff pattern:$0x75316420]
    %169 = vrot.lane.b32.xlu0 %v165, 113
    %v170 = vpop.permute.xlu0 %169
    %171 = vrot.lane.b32.xlu0 %v166, 113
    %v172 = vpop.permute.xlu0 %171
    %vm173 = vcmp.lt.s32.totalorder %v68, 113
    %v174 = vsel %vm173, %v170, %v172
    %v175 = vsel %vm173, %v172, %v170
    %s176 = scalar_lea.vmem [#allocation6], 5
    %v177 = vld [vmem:[%s176] ss:$8 sm:$0x3]
    %v179 = vperm.slane %v177, 0
    %v180 = vperm.slane %v177, 1
    %v183 = vmul.f32 %v179, %v174
    %v184 = vmul.f32 %v180, %v175
    %185 = vst [vmem:[#allocation1] ss:$2 sm:$0xff] %v56
    %v186 = vld.sshfl [vmem:[#allocation1] sm:$0xff pattern:$0x75316420]
    %v187 = vld.sshfl [vmem:[#allocation1 + $0x8] sm:$0xff pattern:$0x75316420]
    %190 = vrot.lane.b32.xlu0 %v186, 112
    %v191 = vpop.permute.xlu0 %190
    %192 = vrot.lane.b32.xlu0 %v187, 112
    %v193 = vpop.permute.xlu0 %192
    %vm194 = vcmp.lt.s32.totalorder %v68, 112
    %v195 = vsel %vm194, %v191, %v193
    %v196 = vsel %vm194, %v193, %v191
    %s197 = scalar_lea.vmem [#allocation6], 6
    %v198 = vld [vmem:[%s197] ss:$8 sm:$0x3]
    %v200 = vperm.slane %v198, 0
    %v201 = vperm.slane %v198, 1
    %v204 = vmul.f32 %v200, %v195
    %v205 = vmul.f32 %v201, %v196
    %206 = vst [vmem:[#allocation1] ss:$2 sm:$0xff] %v56
    %v207 = vld.sshfl [vmem:[#allocation1] sm:$0xff pattern:$0x75316420]
    %v208 = vld.sshfl [vmem:[#allocation1 + $0x8] sm:$0xff pattern:$0x75316420]
    %211 = vrot.lane.b32.xlu0 %v207, 111
    %v212 = vpop.permute.xlu0 %211
    %213 = vrot.lane.b32.xlu0 %v208, 111
    %v214 = vpop.permute.xlu0 %213
    %vm215 = vcmp.lt.s32.totalorder %v68, 111
    %v216 = vsel %vm215, %v212, %v214
    %v217 = vsel %vm215, %v214, %v212
    %s218 = scalar_lea.vmem [#allocation6], 7
    %v219 = vld [vmem:[%s218] ss:$8 sm:$0x3]
    %v221 = vperm.slane %v219, 0
    %v222 = vperm.slane %v219, 1
    %v225 = vmul.f32 %v221, %v216
    %v226 = vmul.f32 %v222, %v217
    %s227 = sld [smem:[#allocation2]]
    %s228 = sld [smem:[#allocation2 + $0x1]]
    %s229 = sld [smem:[#allocation2 + $0x2]]
    %s230 = sld [smem:[#allocation2 + $0x3]]
    %s231 = sld [smem:[#allocation2 + $0x4]]
    %s232 = sld [smem:[#allocation2 + $0x5]]
    %s233 = sld [smem:[#allocation2 + $0x6]]
    %s234 = sld [smem:[#allocation2 + $0x7]]
    %s235 = sld [smem:[#allocation2 + $0x8]]
    %v236 = vstv %s231
    %v237 = vmul.f32 %v236, %v56
    %v238 = vstv %s227
    %v239 = vmul.f32 %v238, %v78
    %v240 = vmul.f32 %v238, %v79
    %v243 = vrot.slane %v240, 4
    %vm244 = vcmask 1043456
    %v245 = vsel %vm244, %v239, %v243
    %v247 = vadd.f32 %v237, %v245
    %v248 = vstv %s228
    %v249 = vmul.f32 %v248, %v99
    %v250 = vmul.f32 %v248, %v100
    %v253 = vrot.slane %v250, 4
    %v254 = vsel %vm244, %v249, %v253
    %v256 = vadd.f32 %v247, %v254
    %v257 = vstv %s229
    %v258 = vmul.f32 %v257, %v120
    %v259 = vmul.f32 %v257, %v121
    %v262 = vrot.slane %v259, 4
    %v263 = vsel %vm244, %v258, %v262
    %v265 = vadd.f32 %v256, %v263
    %v266 = vstv %s230
    %v267 = vmul.f32 %v266, %v141
    %v268 = vmul.f32 %v266, %v142
    %v271 = vrot.slane %v268, 4
    %v272 = vsel %vm244, %v267, %v271
    %v274 = vadd.f32 %v265, %v272
    %v275 = vstv %s232
    %v276 = vmul.f32 %v275, %v162
    %v277 = vmul.f32 %v275, %v163
    %v280 = vrot.slane %v277, 4
    %v281 = vsel %vm244, %v276, %v280
    %v283 = vadd.f32 %v274, %v281
    %v284 = vstv %s233
    %v285 = vmul.f32 %v284, %v183
    %v286 = vmul.f32 %v284, %v184
    %v289 = vrot.slane %v286, 4
    %v290 = vsel %vm244, %v285, %v289
    %v292 = vadd.f32 %v283, %v290
    %v293 = vstv %s234
    %v294 = vmul.f32 %v293, %v204
    %v295 = vmul.f32 %v293, %v205
    %v298 = vrot.slane %v295, 4
    %v299 = vsel %vm244, %v294, %v298
    %v301 = vadd.f32 %v292, %v299
    %v302 = vstv %s235
    %v303 = vmul.f32 %v302, %v225
    %v304 = vmul.f32 %v302, %v226
    %v307 = vrot.slane %v304, 4
    %v308 = vsel %vm244, %v303, %v307
    %v310 = vadd.f32 %v301, %v308
    %311 = vst [vmem:[#allocation9] sm:$0xff] %v310
    %s312 = sld [smem:[#allocation2 + $0x9]]
    %s313 = sld [smem:[#allocation2 + $0xa]]
    %s314 = sld [smem:[#allocation2 + $0xb]]
    %s315 = sld [smem:[#allocation2 + $0xc]]
    %s316 = sld [smem:[#allocation2 + $0xd]]
    %s317 = sld [smem:[#allocation2 + $0xe]]
    %s318 = sld [smem:[#allocation2 + $0xf]]
    %s319 = sld [smem:[#allocation2 + $0x10]]
    %s320 = sld [smem:[#allocation2 + $0x11]]
    %v321 = vstv %s316
    %v322 = vmul.f32 %v321, %v56
    %v323 = vstv %s312
    %v324 = vmul.f32 %v323, %v78
    %v325 = vmul.f32 %v323, %v79
    %v328 = vrot.slane %v325, 4
    %v329 = vsel %vm244, %v324, %v328
    %v331 = vadd.f32 %v322, %v329
    %v332 = vstv %s313
    %v333 = vmul.f32 %v332, %v99
    %v334 = vmul.f32 %v332, %v100
    %v337 = vrot.slane %v334, 4
    %v338 = vsel %vm244, %v333, %v337
    %v340 = vadd.f32 %v331, %v338
    %v341 = vstv %s314
    %v342 = vmul.f32 %v341, %v120
    %v343 = vmul.f32 %v341, %v121
    %v346 = vrot.slane %v343, 4
    %v347 = vsel %vm244, %v342, %v346
    %v349 = vadd.f32 %v340, %v347
    %v350 = vstv %s315
    %v351 = vmul.f32 %v350, %v141
    %v352 = vmul.f32 %v350, %v142
    %v355 = vrot.slane %v352, 4
    %v356 = vsel %vm244, %v351, %v355
    %v358 = vadd.f32 %v349, %v356
    %v359 = vstv %s317
    %v360 = vmul.f32 %v359, %v162
    %v361 = vmul.f32 %v359, %v163
    %v364 = vrot.slane %v361, 4
    %v365 = vsel %vm244, %v360, %v364
    %v367 = vadd.f32 %v358, %v365
    %v368 = vstv %s318
    %v369 = vmul.f32 %v368, %v183
    %v370 = vmul.f32 %v368, %v184
    %v373 = vrot.slane %v370, 4
    %v374 = vsel %vm244, %v369, %v373
    %v376 = vadd.f32 %v367, %v374
    %v377 = vstv %s319
    %v378 = vmul.f32 %v377, %v204
    %v379 = vmul.f32 %v377, %v205
    %v382 = vrot.slane %v379, 4
    %v383 = vsel %vm244, %v378, %v382
    %v385 = vadd.f32 %v376, %v383
    %v386 = vstv %s320
    %v387 = vmul.f32 %v386, %v225
    %v388 = vmul.f32 %v386, %v226
    %v391 = vrot.slane %v388, 4
    %v392 = vsel %vm244, %v387, %v391
    %v394 = vadd.f32 %v385, %v392
    %s395 = scalar_lea.vmem [#allocation9], 8
    %396 = vst [vmem:[%s395] sm:$0xff] %v394
    // Predicated region
    $region26: #{tpu_custom_call.1} parent=1 // pred_check
      _
    $region27: #{tpu_custom_call.1} parent=1 // pred_check_branch
      %398 = sbr.rel (0) target = $region29
    $region28: #{tpu_custom_call.1} parent=1 // pred_region
      %400 = vsyncadd [#allocation4], 0
      %s401 = sshll.u32 [#allocation9], 4
      %s402 = int_to_ptr.vmem [resolvable:$true] %s401
      %s403 = sshll.u32 %s3, 4
      %s404 = int_to_ptr.hbm [resolvable:$true] %s403
      %409 = dma.vmem_to_hbm [thread:$0]  %s402, 256, %s404, [#allocation4], 128, 128, 8
    $region29: #{tpu_custom_call.1} parent=1 // pred_fallthru
      _
    // Predicated region
    $region30: #{tpu_custom_call.1} parent=1 // pred_check
      _
    $region31: #{tpu_custom_call.1} parent=1 // pred_check_branch
      %411 = sbr.rel (0) target = $region33
    $region32: #{tpu_custom_call.1} parent=1 // pred_region
      %413 = dma.done [#allocation4], 256
    $region33: #{tpu_custom_call.1} parent=1 // pred_fallthru
      _
    %414 = vsyncpa [#allocation3], 1
    %415 = vsyncpa [#allocation8], 1
    %416 = vsyncpa [#allocation4], 1
    %417 = vsyncpa [#allocation5], 1

</llo_original>
